<compile_context>
chip_gen: v6e
topology: v6e:2x2x1
jax: 0.10.0
libtpu: 0.0.40
codegen_flags: <defaults>
</compile_context>

<pallas_src>
import functools

import jax
import jax.numpy as jnp
from jax import lax
from jax.experimental import pallas as pl
from jax.experimental.pallas import tpu as pltpu

M_TILE = 512                   # rows per stem matmul / BN-apply grid step
LANE = 128
BN_EPS = 1e-5
GROWTH = 32
BN_SIZE = 4
BLOCK_CONFIG = (6, 12, 24, 16)
NUM_INIT_FEATURES = 64
VMEM_LIMIT = 48 * 1024 * 1024  # <= ~48 MiB is safe on v5e/v6e/v7x


def _rup(x, m):
    return ((x + m - 1) // m) * m


# ----------------------- stem conv matmul (+ fused stats) --------------------

def _stem_kernel(a_ref, w_ref, y_ref, st_ref):
    i = pl.program_id(0)

    @pl.when(i == 0)
    def _():
        st_ref[...] = jnp.zeros_like(st_ref)

    y = jnp.dot(a_ref[...], w_ref[...], preferred_element_type=jnp.float32)
    y_ref[...] = y.astype(y_ref.dtype)
    st_ref[...] += jnp.concatenate(
        [jnp.sum(y, axis=0, keepdims=True),
         jnp.sum(y * y, axis=0, keepdims=True)], axis=0)


@functools.lru_cache(maxsize=None)
def _stem_call(m_pad, k_pad, n_pad):
    return jax.jit(pl.pallas_call(
        _stem_kernel,
        out_shape=(jax.ShapeDtypeStruct((m_pad, n_pad), jnp.bfloat16),
                   jax.ShapeDtypeStruct((2, n_pad), jnp.float32)),
        grid=(m_pad // M_TILE,),
        in_specs=[pl.BlockSpec((M_TILE, k_pad), lambda i: (i, 0)),
                  pl.BlockSpec((k_pad, n_pad), lambda i: (0, 0))],
        out_specs=(pl.BlockSpec((M_TILE, n_pad), lambda i: (i, 0)),
                   pl.BlockSpec((2, n_pad), lambda i: (0, 0))),
        compiler_params=pltpu.CompilerParams(
            dimension_semantics=("arbitrary",),
            vmem_limit_bytes=VMEM_LIMIT)))


# -------------------------- BN apply (+ReLU), stem only ----------------------

def _bn_apply_kernel(ss_ref, x_ref, o_ref):
    ss = ss_ref[...]
    y = x_ref[...].astype(jnp.float32) * ss[0:1, :] + ss[1:2, :]
    o_ref[...] = jnp.maximum(y, 0.0).astype(o_ref.dtype)


@functools.lru_cache(maxsize=None)
def _bn_apply_call(m_pad, c_pad):
    return jax.jit(pl.pallas_call(
        _bn_apply_kernel,
        out_shape=jax.ShapeDtypeStruct((m_pad, c_pad), jnp.bfloat16),
        grid=(m_pad // M_TILE,),
        in_specs=[pl.BlockSpec((2, c_pad), lambda i: (0, 0)),
                  pl.BlockSpec((M_TILE, c_pad), lambda i: (i, 0))],
        out_specs=pl.BlockSpec((M_TILE, c_pad), lambda i: (i, 0)),
        compiler_params=pltpu.CompilerParams(
            dimension_semantics=("parallel",),
            vmem_limit_bytes=VMEM_LIMIT)))


# -------------------- per-channel stats of a block's input -------------------

def _stats_kernel(x_ref, st_ref):
    nn = pl.program_id(0)

    @pl.when(nn == 0)
    def _():
        st_ref[...] = jnp.zeros_like(st_ref)

    x = x_ref[0].astype(jnp.float32)
    st_ref[...] += jnp.concatenate(
        [jnp.sum(x, axis=0, keepdims=True),
         jnp.sum(x * x, axis=0, keepdims=True)], axis=0)


@functools.lru_cache(maxsize=None)
def _stats_call(n, hw, c_pad, c_buf):
    del c_buf
    return jax.jit(pl.pallas_call(
        _stats_kernel,
        out_shape=jax.ShapeDtypeStruct((2, c_pad), jnp.float32),
        grid=(n,),
        in_specs=[pl.BlockSpec((1, hw, c_pad), lambda i: (i, 0, 0))],
        out_specs=pl.BlockSpec((2, c_pad), lambda i: (0, 0)),
        compiler_params=pltpu.CompilerParams(
            dimension_semantics=("arbitrary",),
            vmem_limit_bytes=VMEM_LIMIT)))


# --------- dense-layer conv1: fused BN1+ReLU -> 1x1 matmul -> stats ----------
# Output is written into a per-image row-padded layout of length
# L = hw + 2*(w+1) so the 3x3 kernel can take its 9 tap windows as contiguous
# row slices (no im2col materialization in HBM).

def _make_conv1_kernel(hw, wdim):
    pad = wdim + 1

    def kernel(ss_ref, x_ref, w_ref, e_ref, st_ref):
        nn = pl.program_id(0)

        @pl.when(nn == 0)
        def _():
            st_ref[...] = jnp.zeros_like(st_ref)

        ss = ss_ref[...]
        x = x_ref[0].astype(jnp.float32)
        a = jnp.maximum(x * ss[0:1, :] + ss[1:2, :], 0.0).astype(jnp.bfloat16)
        y = jnp.dot(a, w_ref[...], preferred_element_type=jnp.float32)
        st_ref[...] += jnp.concatenate(
            [jnp.sum(y, axis=0, keepdims=True),
             jnp.sum(y * y, axis=0, keepdims=True)], axis=0)
        zpad = jnp.zeros((pad, LANE), jnp.bfloat16)
        e_ref[...] = jnp.concatenate(
            [zpad, y.astype(jnp.bfloat16), zpad], axis=0)[None]

    return kernel


@functools.lru_cache(maxsize=None)
def _conv1_call(n, hw, wdim, c_pad, c_buf):
    del c_buf
    L = hw + 2 * (wdim + 1)
    kernel = _make_conv1_kernel(hw, wdim)
    return jax.jit(pl.pallas_call(
        kernel,
        out_shape=(jax.ShapeDtypeStruct((n, L, LANE), jnp.bfloat16),
                   jax.ShapeDtypeStruct((2, LANE), jnp.float32)),
        grid=(n,),
        in_specs=[pl.BlockSpec((2, c_pad), lambda i: (0, 0)),
                  pl.BlockSpec((1, hw, c_pad), lambda i: (i, 0, 0)),
                  pl.BlockSpec((c_pad, LANE), lambda i: (0, 0))],
        out_specs=(pl.BlockSpec((1, L, LANE), lambda i: (i, 0, 0)),
                   pl.BlockSpec((2, LANE), lambda i: (0, 0))),
        compiler_params=pltpu.CompilerParams(
            dimension_semantics=("arbitrary",),
            vmem_limit_bytes=VMEM_LIMIT)))


# ------ dense-layer conv2: fused BN2+ReLU -> 3x3 conv (9 VMEM taps) + stats --

def _make_growth_kernel(hw, wdim):
    pad = wdim + 1
    L = hw + 2 * pad

    def kernel(ss_ref, m_ref, e_ref, w_ref, y2_ref, st_ref):
        nn = pl.program_id(0)

        @pl.when(nn == 0)
        def _():
            st_ref[...] = jnp.zeros_like(st_ref)

        ss = ss_ref[...]
        e = e_ref[0].astype(jnp.float32)                       # (L, 128)
        ridx = lax.broadcasted_iota(jnp.int32, (L, 1), 0)
        valid = (ridx >= pad) & (ridx < pad + hw)              # keep pads zero
        a = jnp.where(valid,
                      jnp.maximum(e * ss[0:1, :] + ss[1:2, :], 0.0),
                      0.0).astype(jnp.bfloat16)
        masks = m_ref[...]                                     # (hw, 2) bf16
        acc = jnp.zeros((hw, LANE), jnp.float32)
        for dy in range(3):
            for dx in range(3):
                t = dy * 3 + dx
                off = dy * wdim + dx
                win = a[off:off + hw, :]
                if dx == 0:
                    win = win * masks[:, 0:1]                  # x == 0 -> 0
                elif dx == 2:
                    win = win * masks[:, 1:2]                  # x == w-1 -> 0
                acc = acc + jnp.dot(win, w_ref[t * LANE:(t + 1) * LANE, :],
                                    preferred_element_type=jnp.float32)
        st_ref[...] += jnp.concatenate(
            [jnp.sum(acc, axis=0, keepdims=True),
             jnp.sum(acc * acc, axis=0, keepdims=True)], axis=0)
        y2_ref[...] = acc[:, 0:GROWTH].astype(jnp.bfloat16)[None]

    return kernel


@functools.lru_cache(maxsize=None)
def _growth_call(n, hw, wdim):
    L = hw + 2 * (wdim + 1)
    kernel = _make_growth_kernel(hw, wdim)
    return jax.jit(pl.pallas_call(
        kernel,
        out_shape=(jax.ShapeDtypeStruct((n, hw, GROWTH), jnp.bfloat16),
                   jax.ShapeDtypeStruct((2, LANE), jnp.float32)),
        grid=(n,),
        in_specs=[pl.BlockSpec((2, LANE), lambda i: (0, 0)),
                  pl.BlockSpec((hw, 2), lambda i: (0, 0)),
                  pl.BlockSpec((1, L, LANE), lambda i: (i, 0, 0)),
                  pl.BlockSpec((9 * LANE, LANE), lambda i: (0, 0))],
        out_specs=(pl.BlockSpec((1, hw, GROWTH), lambda i: (i, 0, 0)),
                   pl.BlockSpec((2, LANE), lambda i: (0, 0))),
        compiler_params=pltpu.CompilerParams(
            dimension_semantics=("arbitrary",),
            vmem_limit_bytes=VMEM_LIMIT)))


# -------------- in-place dense-block growth (aliased HBM buffer) -------------

def _make_write_growth_kernel(n, hw, c_off):
    def kernel(feat_in_ref, growth_ref, feat_out_ref, sem):
        del feat_in_ref  # aliased with feat_out_ref
        cp = pltpu.make_async_copy(
            growth_ref,
            feat_out_ref.at[pl.ds(0, n), pl.ds(0, hw), pl.ds(c_off, GROWTH)],
            sem)
        cp.start()
        cp.wait()
    return kernel


@functools.lru_cache(maxsize=None)
def _write_growth_call(n, hw, c_buf, c_off):
    call = pl.pallas_call(
        _make_write_growth_kernel(n, hw, c_off),
        out_shape=jax.ShapeDtypeStruct((n, hw, c_buf), jnp.bfloat16),
        in_specs=[pl.BlockSpec(memory_space=pl.ANY),
                  pl.BlockSpec(memory_space=pl.ANY)],
        out_specs=pl.BlockSpec(memory_space=pl.ANY),
        scratch_shapes=[pltpu.SemaphoreType.DMA],
        input_output_aliases={0: 0},
    )
    return jax.jit(call, donate_argnums=(0,))


# -------------------- transition: fused BN+ReLU -> 1x1 matmul ----------------

def _trans_kernel(ss_ref, x_ref, w_ref, o_ref):
    ss = ss_ref[...]
    x = x_ref[0].astype(jnp.float32)
    a = jnp.maximum(x * ss[0:1, :] + ss[1:2, :], 0.0).astype(jnp.bfloat16)
    y = jnp.dot(a, w_ref[...], preferred_element_type=jnp.float32)
    o_ref[...] = y.astype(jnp.bfloat16)[None]


@functools.lru_cache(maxsize=None)
def _trans_call(n, hw, c_pad, n_out):
    return jax.jit(pl.pallas_call(
        _trans_kernel,
        out_shape=jax.ShapeDtypeStruct((n, hw, n_out), jnp.bfloat16),
        grid=(n,),
        in_specs=[pl.BlockSpec((2, c_pad), lambda i: (0, 0)),
                  pl.BlockSpec((1, hw, c_pad), lambda i: (i, 0, 0)),
                  pl.BlockSpec((c_pad, n_out), lambda i: (0, 0))],
        out_specs=pl.BlockSpec((1, hw, n_out), lambda i: (i, 0, 0)),
        compiler_params=pltpu.CompilerParams(
            dimension_semantics=("parallel",),
            vmem_limit_bytes=VMEM_LIMIT)))


# ------------- fused norm5 + ReLU + global average pool (per image) ----------

def _gap_kernel(ss_ref, x_ref, o_ref):
    ss = ss_ref[...]
    x = x_ref[0].astype(jnp.float32)
    a = jnp.maximum(x * ss[0:1, :] + ss[1:2, :], 0.0)
    o_ref[...] = jnp.mean(a, axis=0, keepdims=True)


@functools.lru_cache(maxsize=None)
def _gap_call(n, hw, c):
    return jax.jit(pl.pallas_call(
        _gap_kernel,
        out_shape=jax.ShapeDtypeStruct((n, c), jnp.float32),
        grid=(n,),
        in_specs=[pl.BlockSpec((2, c), lambda i: (0, 0)),
                  pl.BlockSpec((1, hw, c), lambda i: (i, 0, 0))],
        out_specs=pl.BlockSpec((1, c), lambda i: (i, 0)),
        compiler_params=pltpu.CompilerParams(
            dimension_semantics=("parallel",),
            vmem_limit_bytes=VMEM_LIMIT)))


# ------------------------------ plain-JAX glue --------------------------------

def _im2col(x, kh, kw, stride, pad):
    # TODO(synk): only used for the 7x7 stem (3 input channels); dense-layer
    # 3x3 convs are done with in-VMEM tap windows instead of im2col.
    n, h, w, c = x.shape
    ho = (h + 2 * pad - kh) // stride + 1
    wo = (w + 2 * pad - kw) // stride + 1
    xp = jnp.pad(x, ((0, 0), (pad, pad), (pad, pad), (0, 0)))
    cols = []
    for dy in range(kh):
        for dx in range(kw):
            cols.append(xp[:, dy:dy + stride * ho:stride,
                            dx:dx + stride * wo:stride, :])
    patches = jnp.concatenate(cols, axis=-1)
    return patches.reshape(n * ho * wo, kh * kw * c), (n, ho, wo)


def maxpool_3x3_s2_p1(x):
    # TODO(synk): max/avg pooling kept as plain-JAX glue.
    return lax.reduce_window(x, -jnp.inf, lax.max,
                             window_dimensions=(1, 3, 3, 1),
                             window_strides=(1, 2, 2, 1),
                             padding=((0, 0), (1, 1), (1, 1), (0, 0)))


def avgpool_2x2(x):
    n, h, w, c = x.shape
    return x.reshape(n, h // 2, 2, w // 2, 2, c).mean(axis=(2, 4))


def _scale_shift(stats, gamma_beta, count):
    """(2,C) raw sum/sum^2 + (2,C) gamma/beta -> (2,C) scale/shift (tiny)."""
    mean = stats[0:1] / count
    var = jnp.maximum(stats[1:2] / count - mean * mean, 0.0)
    inv = lax.rsqrt(var + BN_EPS)
    scale = gamma_beta[0:1] * inv
    shift = gamma_beta[1:2] - mean * scale
    return jnp.concatenate([scale, shift], axis=0)


# ----------------------------- parameters -------------------------------------

def _init_conv(key, cin, cout, k):
    fan_in = cin * k * k
    std = (2.0 / fan_in) ** 0.5   # kaiming_normal_ (fan_in, relu)
    w = jax.random.normal(key, (k * k * cin, cout), jnp.float32) * std
    k_pad = _rup(k * k * cin, LANE)
    n_pad = _rup(cout, LANE)
    mat = jnp.pad(w, ((0, k_pad - k * k * cin),
                      (0, n_pad - cout))).astype(jnp.bfloat16)
    return {'mat': mat, 'cin': cin, 'cout': cout, 'k_pad': k_pad, 'n_pad': n_pad}


def _init_bn(c):
    # torchvision init: weight=1, bias=0; padded channels get gamma=beta=0 so
    # they stay exactly zero through every fused BN path.
    c_pad = _rup(c, LANE)
    gamma = jnp.pad(jnp.ones((1, c), jnp.float32), ((0, 0), (0, c_pad - c)))
    beta = jnp.zeros((1, c_pad), jnp.float32)
    return jnp.concatenate([gamma, beta], axis=0)   # (2, c_pad)


def init_densenet121_params(key):
    params = {}
    keys = list(jax.random.split(key, 256))
    ki = iter(range(256))
    params['conv0'] = _init_conv(keys[next(ki)], 3, NUM_INIT_FEATURES, 7)
    params['norm0'] = _init_bn(NUM_INIT_FEATURES)
    num_features = NUM_INIT_FEATURES
    for b, num_layers in enumerate(BLOCK_CONFIG):
        for l in range(num_layers):
            cin = num_features + l * GROWTH
            params[f'db{b}_l{l}'] = {
                'norm1': _init_bn(cin),
                'conv1': _init_conv(keys[next(ki)], cin, BN_SIZE * GROWTH, 1),
                'norm2': _init_bn(BN_SIZE * GROWTH),
                'conv2': _init_conv(keys[next(ki)], BN_SIZE * GROWTH, GROWTH, 3),
            }
        num_features += num_layers * GROWTH
        if b != len(BLOCK_CONFIG) - 1:
            params[f'trans{b}'] = {
                'norm': _init_bn(num_features),
                'conv': _init_conv(keys[next(ki)], num_features,
                                   num_features // 2, 1),
            }
            num_features //= 2
    params['norm5'] = _init_bn(num_features)  # 1024
    return params


# ------------------------------- forward ---------------------------------------

def _dense_layer(feat, stats_feat, spatial, c, p, masks):
    n, h, w = spatial
    hw = h * w
    c_buf = feat.shape[2]
    count = float(n * hw)
    c_pad = p['norm1'].shape[1]                         # rup(c, 128)
    ss1 = _scale_shift(stats_feat[:, :c_pad], p['norm1'], count)
    e, st1 = _conv1_call(n, hw, w, c_pad, c_buf)(ss1, feat, p['conv1']['mat'])
    ss2 = _scale_shift(st1, p['norm2'], count)
    y2, stg = _growth_call(n, hw, w)(ss2, masks, e, p['conv2']['mat'])
    feat = _write_growth_call(n, hw, c_buf, c)(feat, y2)
    stats_feat = lax.dynamic_update_slice(stats_feat, stg[:, :GROWTH], (0, c))
    return feat, stats_feat


def densenet121_forward(params, x_nchw):
    """Feature-extractor forward.  x_nchw: (N, 3, H, W) f32 -> (N, 1024) f32."""
    # ---- stem: conv7x7/s2 -> BN -> ReLU -> maxpool3x3/s2 ----
    x = jnp.transpose(x_nchw, (0, 2, 3, 1)).astype(jnp.bfloat16)
    a, (n, h0, w0) = _im2col(x, 7, 7, 2, 3)
    m0 = n * h0 * w0
    c0p = params['conv0']
    m_pad = max(M_TILE, _rup(m0, M_TILE))
    a = jnp.pad(a, ((0, m_pad - m0), (0, c0p['k_pad'] - a.shape[1])))
    y0, st0 = _stem_call(m_pad, c0p['k_pad'], c0p['n_pad'])(a, c0p['mat'])
    ss0 = _scale_shift(st0, params['norm0'], float(m0))
    act = _bn_apply_call(m_pad, c0p['n_pad'])(ss0, y0)
    act = act[:m0, :NUM_INIT_FEATURES].astype(jnp.float32).reshape(
        n, h0, w0, NUM_INIT_FEATURES)
    xsp = maxpool_3x3_s2_p1(act)
    _, h, w, c = xsp.shape
    x_flat = xsp.reshape(n, h * w, c).astype(jnp.bfloat16)

    # ---- dense blocks + transitions ----
    feat = None
    stats_feat = None
    for b, num_layers in enumerate(BLOCK_CONFIG):
        hw = h * w
        c0 = x_flat.shape[2]
        c_final = c0 + GROWTH * num_layers
        feat = jnp.pad(x_flat, ((0, 0), (0, 0), (0, c_final - c0)))
        cs_pad = _rup(c0, LANE)
        st = _stats_call(n, hw, cs_pad, c_final)(feat)
        stats_feat = jnp.pad(st, ((0, 0), (0, c_final - cs_pad)))
        col = (jnp.arange(hw, dtype=jnp.int32) % w)[:, None]
        masks = jnp.concatenate([(col != 0), (col != w - 1)],
                                axis=1).astype(jnp.bfloat16)
        c = c0
        for l in range(num_layers):
            feat, stats_feat = _dense_layer(feat, stats_feat, (n, h, w), c,
                                            params[f'db{b}_l{l}'], masks)
            c += GROWTH
        if b != len(BLOCK_CONFIG) - 1:
            p = params[f'trans{b}']
            ss = _scale_shift(stats_feat, p['norm'], float(n * hw))
            y = _trans_call(n, hw, c_final, p['conv']['n_pad'])(
                ss, feat, p['conv']['mat'])
            cout = p['conv']['cout']
            ysp = y[:, :, :cout].reshape(n, h, w, cout).astype(jnp.float32)
            ysp = avgpool_2x2(ysp)
            h, w = h // 2, w // 2
            x_flat = ysp.reshape(n, h * w, cout).astype(jnp.bfloat16)

    # ---- norm5 -> ReLU -> adaptive_avg_pool2d((1,1)) -> flatten (Identity) ----
    ss5 = _scale_shift(stats_feat, params['norm5'], float(n * h * w))
    return _gap_call(n, h * w, feat.shape[2])(ss5, feat)


if __name__ == "__main__":
    key = jax.random.PRNGKey(0)
    pkey, xkey = jax.random.split(key)
    params = init_densenet121_params(pkey)
    x = jax.random.normal(xkey, (2, 3, 32, 32), jnp.float32)  # small NCHW input
    out = densenet121_forward(params, x)
    out = jax.block_until_ready(out)
    assert out.shape == (2, 1024), out.shape
    assert bool(jnp.all(jnp.isfinite(out)))
    print("KERNEL_OK")
</pallas_src>

<mosaic_0001>
module attributes {stable_mosaic.version = 11 : i64} {
  func.func @_stem_kernel(%arg0: i32, %arg1: memref<512x256xbf16, #tpu.memory_space<vmem>>, %arg2: memref<256x128xbf16, #tpu.memory_space<vmem>>, %arg3: memref<512x128xbf16, #tpu.memory_space<vmem>>, %arg4: memref<2x128xf32, #tpu.memory_space<vmem>>) attributes {dimension_semantics = [#tpu.dimension_semantics<arbitrary>], iteration_bounds = array<i64: 1>, scalar_prefetch = 0 : i64, scratch_operands = 0 : i64, tpu.core_type = #tpu.core_type<tc>, window_params = [{transform_indices = @transform_0, window_bounds = array<i64: 512, 256>}, {pipeline_mode = #tpu.pipeline_mode<synchronous>, transform_indices = @transform_1, window_bounds = array<i64: 256, 128>}, {transform_indices = @transform_2, window_bounds = array<i64: 512, 128>}, {pipeline_mode = #tpu.pipeline_mode<synchronous>, transform_indices = @transform_3, window_bounds = array<i64: 2, 128>}]} {
    %c0_i32 = arith.constant 0 : i32
    %0 = arith.cmpi eq, %arg0, %c0_i32 : i32
    %1 = arith.extui %0 : i1 to i32
    %c0_i32_0 = arith.constant 0 : i32
    %2 = arith.cmpi ne, %1, %c0_i32_0 : i32
    scf.if %2 {
      %cst_12 = arith.constant 0.000000e+00 : f32
      %17 = vector.broadcast %cst_12 : f32 to vector<2x128xf32>
      %c0_13 = arith.constant 0 : index
      %c0_14 = arith.constant 0 : index
      %18 = vector.load %arg4[%c0_13, %c0_14] : memref<2x128xf32, #tpu.memory_space<vmem>>, vector<2x128xf32>
      tpu.vector_store %arg4[%c0_13, %c0_14], %17 {strides = array<i32>} : memref<2x128xf32, #tpu.memory_space<vmem>>, vector<2x128xf32>,
    } else {
    }
    %c0 = arith.constant 0 : index
    %c0_1 = arith.constant 0 : index
    %3 = vector.load %arg1[%c0, %c0_1] : memref<512x256xbf16, #tpu.memory_space<vmem>>, vector<512x256xbf16>
    %c0_2 = arith.constant 0 : index
    %c0_3 = arith.constant 0 : index
    %4 = vector.load %arg2[%c0_2, %c0_3] : memref<256x128xbf16, #tpu.memory_space<vmem>>, vector<256x128xbf16>
    %cst = arith.constant dense<0.000000e+00> : vector<512x128xf32>
    %5 = tpu.matmul %3, %4, %cst {dimension_numbers = #tpu.dot_dimension_numbers<[1], [0], [0], [1], [0, 0, 1, 1], [], []>} : vector<512x256xbf16>, vector<256x128xbf16>, vector<512x128xf32> -> vector<512x128xf32>
    %6 = arith.truncf %5 : vector<512x128xf32> to vector<512x128xbf16>
    %c0_4 = arith.constant 0 : index
    %c0_5 = arith.constant 0 : index
    %7 = vector.load %arg3[%c0_4, %c0_5] : memref<512x128xbf16, #tpu.memory_space<vmem>>, vector<512x128xbf16>
    tpu.vector_store %arg3[%c0_4, %c0_5], %6 {strides = array<i32>} : memref<512x128xbf16, #tpu.memory_space<vmem>>, vector<512x128xbf16>,
    %c0_6 = arith.constant 0 : index
    %c0_7 = arith.constant 0 : index
    %8 = vector.load %arg4[%c0_6, %c0_7] : memref<2x128xf32, #tpu.memory_space<vmem>>, vector<2x128xf32>
    %cst_8 = arith.constant dense<0.000000e+00> : vector<128xf32>
    %9 = vector.multi_reduction <add>, %5, %cst_8 [0] : vector<512x128xf32> to vector<128xf32>
    %10 = vector.shape_cast %9 : vector<128xf32> to vector<1x128xf32>
    %11 = arith.mulf %5, %5 : vector<512x128xf32>
    %cst_9 = arith.constant dense<0.000000e+00> : vector<128xf32>
    %12 = vector.multi_reduction <add>, %11, %cst_9 [0] : vector<512x128xf32> to vector<128xf32>
    %13 = vector.shape_cast %12 : vector<128xf32> to vector<1x128xf32>
    %14 = tpu.concatenate %10, %13 in 0 : vector<1x128xf32>, vector<1x128xf32> -> vector<2x128xf32>
    %15 = arith.addf %8, %14 : vector<2x128xf32>
    %c0_10 = arith.constant 0 : index
    %c0_11 = arith.constant 0 : index
    %16 = vector.load %arg4[%c0_10, %c0_11] : memref<2x128xf32, #tpu.memory_space<vmem>>, vector<2x128xf32>
    tpu.vector_store %arg4[%c0_10, %c0_11], %15 {strides = array<i32>} : memref<2x128xf32, #tpu.memory_space<vmem>>, vector<2x128xf32>,
    return
  }
  func.func @transform_0(%arg0: i32) -> (i32, i32) {
    %c0_i32 = arith.constant 0 : i32
    %c0_i32_0 = arith.constant 0 : i32
    return %arg0, %c0_i32 : i32, i32
  }
  func.func @transform_1(%arg0: i32) -> (i32, i32) {
    %c0_i32 = arith.constant 0 : i32
    %c0_i32_0 = arith.constant 0 : i32
    %c0_i32_1 = arith.constant 0 : i32
    return %c0_i32, %c0_i32_0 : i32, i32
  }
  func.func @transform_2(%arg0: i32) -> (i32, i32) {
    %c0_i32 = arith.constant 0 : i32
    %c0_i32_0 = arith.constant 0 : i32
    return %arg0, %c0_i32 : i32, i32
  }
  func.func @transform_3(%arg0: i32) -> (i32, i32) {
    %c0_i32 = arith.constant 0 : i32
    %c0_i32_0 = arith.constant 0 : i32
    %c0_i32_1 = arith.constant 0 : i32
    return %c0_i32, %c0_i32_0 : i32, i32
  }
}

</mosaic_0001>

<llo_original>
// kernel: tpu_custom_call.1
$region0: #{tpu_custom_call.1}
  #allocation0 [shape = 'u32[]', space=smem, size = 0x4, offset = 0x4, fixed_abs, tag = 'smem constant byte address 0x4 - core index']
  #allocation1 [shape = 'u32[144,128]{1,0:T(1,128)}', space=vmem, size = 0x12000, scoped, tag = 'internal scratch']
  %s0 = inlined_call_operand.hbm [shape: bf16[512,256], index: 0, kind: input, shape index: {}]
  %s1 = inlined_call_operand.hbm [shape: bf16[256,128], index: 1, kind: input, shape index: {}]
  %s2 = inlined_call_operand.hbm [shape: bf16[512,128], index: 2, kind: output, shape index: {0}]
  %s3 = inlined_call_operand.hbm [shape: f32[2,128], index: 3, kind: output, shape index: {1}]
  %4 = xla_tuple %s2, %s3
  %s5 = sld [smem:[#allocation0]]
  $region38: #{tpu_custom_call.1} parent=0
    _
  %s7 = ssub.s32 1, %s5
  %s8 = scalar_select 0, %s7, %s5
  $region1: #{tpu_custom_call.1} parent=0
    #allocation2 [shape = 'u8[262144]{0}', space=vmem, size = 0x40000, scoped, tag = 'input window, operand 0, single buffered']
    #allocation3 [shape = 's32[1]{0}', space=sflag, size = 0x4, scoped, tag = 'scoped memory for tpu_custom_call.1']
    #allocation4 [shape = 's32[1]{0}', space=sflag, size = 0x4, scoped, tag = 'scoped memory for tpu_custom_call.1']
    #allocation5 [shape = 'u8[65536]{0}', space=vmem, size = 0x10000, scoped, tag = 'input window, operand 1, single buffered']
    #allocation6 [shape = 's32[1]{0}', space=sflag, size = 0x4, scoped, tag = 'scoped memory for tpu_custom_call.1']
    #allocation7 [shape = 'u8[131072]{0}', space=vmem, size = 0x20000, scoped, tag = 'output window, operand 0, single buffered']
    #allocation8 [shape = 'u8[1024]{0}', space=vmem, size = 0x400, scoped, tag = 'output window, operand 1, single buffered']
    #allocation9 [shape = 's32[1]{0}', space=sflag, size = 0x4, scoped, tag = 'scoped memory for tpu_custom_call.1']
    %9 = vsyncpa [#allocation3], 0
    %10 = vsyncpa [#allocation6], 0
    %11 = vsyncpa [#allocation4], 0
    %12 = vsyncpa [#allocation9], 0
    // Predicated region
    $region2: #{tpu_custom_call.1} parent=1 // pred_check
      _
    $region3: #{tpu_custom_call.1} parent=1 // pred_check_branch
      %14 = sbr.rel (0) target = $region5
    $region4: #{tpu_custom_call.1} parent=1 // pred_region
      %s16 = ssub.s32 8192, 8192
      %17 = vsyncadd [#allocation3], %s16
      %s18 = sshll.u32 [#allocation2], 4
      %s19 = int_to_ptr.vmem [resolvable:$true] %s18
      %24 = dma.hbm_to_vmem [thread:$0]  %s0, 8192, %s19, [#allocation3], 128, 128, 8
    $region5: #{tpu_custom_call.1} parent=1 // pred_fallthru
      _
    // Predicated region
    $region6: #{tpu_custom_call.1} parent=1 // pred_check
      _
    $region7: #{tpu_custom_call.1} parent=1 // pred_check_branch
      %26 = sbr.rel (0) target = $region9
    $region8: #{tpu_custom_call.1} parent=1 // pred_region
      %s28 = ssub.s32 2048, 2048
      %29 = vsyncadd [#allocation6], %s28
      %s30 = sshll.u32 [#allocation5], 4
      %s31 = int_to_ptr.vmem [resolvable:$true] %s30
      %36 = dma.hbm_to_vmem [thread:$0]  %s1, 2048, %s31, [#allocation6], 64, 64, 4
    $region9: #{tpu_custom_call.1} parent=1 // pred_fallthru
      _
    // Predicated region
    $region10: #{tpu_custom_call.1} parent=1 // pred_check
      _
    $region11: #{tpu_custom_call.1} parent=1 // pred_check_branch
      %38 = sbr.rel (0) target = $region13
    $region12: #{tpu_custom_call.1} parent=1 // pred_region
      %39 = dma.done [#allocation3], 8192
    $region13: #{tpu_custom_call.1} parent=1 // pred_fallthru
      _
    // Predicated region
    $region14: #{tpu_custom_call.1} parent=1 // pred_check
      _
    $region15: #{tpu_custom_call.1} parent=1 // pred_check_branch
      %41 = sbr.rel (0) target = $region17
    $region16: #{tpu_custom_call.1} parent=1 // pred_region
      %42 = dma.done [#allocation6], 2048
    $region17: #{tpu_custom_call.1} parent=1 // pred_fallthru
      _
    %p44 = scmp.eq.s32.totalorder 0, 0
    // Predicated region
    $region18: #{tpu_custom_call.1} parent=1 // pred_check
      %p45 = pneg %p44
    $region19: #{tpu_custom_call.1} parent=1 // pred_check_branch
      %47 = sbr.rel (%p45) target = $region21
    $region20: #{tpu_custom_call.1} parent=1 // pred_region
      %48 = vst [vmem:[#allocation8] sm:$0x3] 0.0
    $region21: #{tpu_custom_call.1} parent=1 // pred_fallthru
      _
    %v49 = vld [vmem:[#allocation2] sm:$0xff]
    %v50 = vld [vmem:[#allocation2 + $0x8] sm:$0xff]
    %v51 = vld [vmem:[#allocation2 + $0x10] sm:$0xff]
    %v52 = vld [vmem:[#allocation2 + $0x18] sm:$0xff]
    %v53 = vld [vmem:[#allocation2 + $0x20] sm:$0xff]
    %v54 = vld [vmem:[#allocation2 + $0x28] sm:$0xff]
    %v55 = vld [vmem:[#allocation2 + $0x30] sm:$0xff]
    %v56 = vld [vmem:[#allocation2 + $0x38] sm:$0xff]
    %v57 = vld [vmem:[#allocation2 + $0x40] sm:$0xff]
    %v58 = vld [vmem:[#allocation2 + $0x48] sm:$0xff]
    %v59 = vld [vmem:[#allocation2 + $0x50] sm:$0xff]
    %v60 = vld [vmem:[#allocation2 + $0x58] sm:$0xff]
    %v61 = vld [vmem:[#allocation2 + $0x60] sm:$0xff]
    %v62 = vld [vmem:[#allocation2 + $0x68] sm:$0xff]
    %v63 = vld [vmem:[#allocation2 + $0x70] sm:$0xff]
    %v64 = vld [vmem:[#allocation2 + $0x78] sm:$0xff]
    %v65 = vld [vmem:[#allocation2 + $0x80] sm:$0xff]
    %v66 = vld [vmem:[#allocation2 + $0x88] sm:$0xff]
    %v67 = vld [vmem:[#allocation2 + $0x90] sm:$0xff]
    %v68 = vld [vmem:[#allocation2 + $0x98] sm:$0xff]
    %v69 = vld [vmem:[#allocation2 + $0xa0] sm:$0xff]
    %v70 = vld [vmem:[#allocation2 + $0xa8] sm:$0xff]
    %v71 = vld [vmem:[#allocation2 + $0xb0] sm:$0xff]
    %v72 = vld [vmem:[#allocation2 + $0xb8] sm:$0xff]
    %v73 = vld [vmem:[#allocation2 + $0xc0] sm:$0xff]
    %v74 = vld [vmem:[#allocation2 + $0xc8] sm:$0xff]
    %v75 = vld [vmem:[#allocation2 + $0xd0] sm:$0xff]
    %v76 = vld [vmem:[#allocation2 + $0xd8] sm:$0xff]
    %v77 = vld [vmem:[#allocation2 + $0xe0] sm:$0xff]
    %v78 = vld [vmem:[#allocation2 + $0xe8] sm:$0xff]
    %v79 = vld [vmem:[#allocation2 + $0xf0] sm:$0xff]
    %v80 = vld [vmem:[#allocation2 + $0xf8] sm:$0xff]
    %v81 = vld [vmem:[#allocation2 + $0x100] sm:$0xff]
    %v82 = vld [vmem:[#allocation2 + $0x108] sm:$0xff]
    %v83 = vld [vmem:[#allocation2 + $0x110] sm:$0xff]
    %v84 = vld [vmem:[#allocation2 + $0x118] sm:$0xff]
    %v85 = vld [vmem:[#allocation2 + $0x120] sm:$0xff]
    %v86 = vld [vmem:[#allocation2 + $0x128] sm:$0xff]
    %v87 = vld [vmem:[#allocation2 + $0x130] sm:$0xff]
    %v88 = vld [vmem:[#allocation2 + $0x138] sm:$0xff]
    %v89 = vld [vmem:[#allocation2 + $0x140] sm:$0xff]
    %v90 = vld [vmem:[#allocation2 + $0x148] sm:$0xff]
    %v91 = vld [vmem:[#allocation2 + $0x150] sm:$0xff]
    %v92 = vld [vmem:[#allocation2 + $0x158] sm:$0xff]
    %v93 = vld [vmem:[#allocation2 + $0x160] sm:$0xff]
    %v94 = vld [vmem:[#allocation2 + $0x168] sm:$0xff]
    %v95 = vld [vmem:[#allocation2 + $0x170] sm:$0xff]
    %v96 = vld [vmem:[#allocation2 + $0x178] sm:$0xff]
    %v97 = vld [vmem:[#allocation2 + $0x180] sm:$0xff]
    %v98 = vld [vmem:[#allocation2 + $0x188] sm:$0xff]
    %v99 = vld [vmem:[#allocation2 + $0x190] sm:$0xff]
    %v100 = vld [vmem:[#allocation2 + $0x198] sm:$0xff]
    %v101 = vld [vmem:[#allocation2 + $0x1a0] sm:$0xff]
    %v102 = vld [vmem:[#allocation2 + $0x1a8] sm:$0xff]
    %v103 = vld [vmem:[#allocation2 + $0x1b0] sm:$0xff]
    %v104 = vld [vmem:[#allocation2 + $0x1b8] sm:$0xff]
    %v105 = vld [vmem:[#allocation2 + $0x1c0] sm:$0xff]
    %v106 = vld [vmem:[#allocation2 + $0x1c8] sm:$0xff]
    %v107 = vld [vmem:[#allocation2 + $0x1d0] sm:$0xff]
    %v108 = vld [vmem:[#allocation2 + $0x1d8] sm:$0xff]
    %v109 = vld [vmem:[#allocation2 + $0x1e0] sm:$0xff]
    %v110 = vld [vmem:[#allocation2 + $0x1e8] sm:$0xff]
    %v111 = vld [vmem:[#allocation2 + $0x1f0] sm:$0xff]
    %v112 = vld [vmem:[#allocation2 + $0x1f8] sm:$0xff]
    %v113 = vld [vmem:[#allocation5] sm:$0xf]
    %v114 = vld [vmem:[#allocation5 + $0x4] sm:$0xf]
    %v115 = vld [vmem:[#allocation5 + $0x8] sm:$0xf]
    %v116 = vld [vmem:[#allocation5 + $0xc] sm:$0xf]
    %v117 = vld [vmem:[#allocation5 + $0x10] sm:$0xf]
    %v118 = vld [vmem:[#allocation5 + $0x14] sm:$0xf]
    %v119 = vld [vmem:[#allocation5 + $0x18] sm:$0xf]
    %v120 = vld [vmem:[#allocation5 + $0x1c] sm:$0xf]
    %v121 = vld [vmem:[#allocation5 + $0x20] sm:$0xf]
    %v122 = vld [vmem:[#allocation5 + $0x24] sm:$0xf]
    %v123 = vld [vmem:[#allocation5 + $0x28] sm:$0xf]
    %v124 = vld [vmem:[#allocation5 + $0x2c] sm:$0xf]
    %v125 = vld [vmem:[#allocation5 + $0x30] sm:$0xf]
    %v126 = vld [vmem:[#allocation5 + $0x34] sm:$0xf]
    %v127 = vld [vmem:[#allocation5 + $0x38] sm:$0xf]
    %v128 = vld [vmem:[#allocation5 + $0x3c] sm:$0xf]
    %v129 = vld [vmem:[#allocation5 + $0x40] sm:$0xf]
    %v130 = vld [vmem:[#allocation5 + $0x44] sm:$0xf]
    %v131 = vld [vmem:[#allocation5 + $0x48] sm:$0xf]
    %v132 = vld [vmem:[#allocation5 + $0x4c] sm:$0xf]
    %v133 = vld [vmem:[#allocation5 + $0x50] sm:$0xf]
    %v134 = vld [vmem:[#allocation5 + $0x54] sm:$0xf]
    %v135 = vld [vmem:[#allocation5 + $0x58] sm:$0xf]
    %v136 = vld [vmem:[#allocation5 + $0x5c] sm:$0xf]
    %v137 = vld [vmem:[#allocation5 + $0x60] sm:$0xf]
    %v138 = vld [vmem:[#allocation5 + $0x64] sm:$0xf]
    %v139 = vld [vmem:[#allocation5 + $0x68] sm:$0xf]
    %v140 = vld [vmem:[#allocation5 + $0x6c] sm:$0xf]
    %v141 = vld [vmem:[#allocation5 + $0x70] sm:$0xf]
    %v142 = vld [vmem:[#allocation5 + $0x74] sm:$0xf]
    %v143 = vld [vmem:[#allocation5 + $0x78] sm:$0xf]
    %v144 = vld [vmem:[#allocation5 + $0x7c] sm:$0xf]
    %v209 = vunpack.c.l.b16 %v49
    %v210 = vunpack.c.h.b16 %v49
    %v211 = vunpack.c.l.b16 %v50
    %v212 = vunpack.c.h.b16 %v50
    %v213 = vunpack.c.l.b16 %v51
    %v214 = vunpack.c.h.b16 %v51
    %v215 = vunpack.c.l.b16 %v52
    %v216 = vunpack.c.h.b16 %v52
    %v217 = vunpack.c.l.b16 %v53
    %v218 = vunpack.c.h.b16 %v53
    %v219 = vunpack.c.l.b16 %v54
    %v220 = vunpack.c.h.b16 %v54
    %v221 = vunpack.c.l.b16 %v55
    %v222 = vunpack.c.h.b16 %v55
    %v223 = vunpack.c.l.b16 %v56
    %v224 = vunpack.c.h.b16 %v56
    %v225 = vunpack.c.l.b16 %v57
    %v226 = vunpack.c.h.b16 %v57
    %v227 = vunpack.c.l.b16 %v58
    %v228 = vunpack.c.h.b16 %v58
    %v229 = vunpack.c.l.b16 %v59
    %v230 = vunpack.c.h.b16 %v59
    %v231 = vunpack.c.l.b16 %v60
    %v232 = vunpack.c.h.b16 %v60
    %v233 = vunpack.c.l.b16 %v61
    %v234 = vunpack.c.h.b16 %v61
    %v235 = vunpack.c.l.b16 %v62
    %v236 = vunpack.c.h.b16 %v62
    %v237 = vunpack.c.l.b16 %v63
    %v238 = vunpack.c.h.b16 %v63
    %v239 = vunpack.c.l.b16 %v64
    %v240 = vunpack.c.h.b16 %v64
    %v241 = vunpack.c.l.b16 %v65
    %v242 = vunpack.c.h.b16 %v65
    %v243 = vunpack.c.l.b16 %v66
    %v244 = vunpack.c.h.b16 %v66
    %v245 = vunpack.c.l.b16 %v67
    %v246 = vunpack.c.h.b16 %v67
    %v247 = vunpack.c.l.b16 %v68
    %v248 = vunpack.c.h.b16 %v68
    %v249 = vunpack.c.l.b16 %v69
    %v250 = vunpack.c.h.b16 %v69
    %v251 = vunpack.c.l.b16 %v70
    %v252 = vunpack.c.h.b16 %v70
    %v253 = vunpack.c.l.b16 %v71
    %v254 = vunpack.c.h.b16 %v71
    %v255 = vunpack.c.l.b16 %v72
    %v256 = vunpack.c.h.b16 %v72
    %v257 = vunpack.c.l.b16 %v73
    %v258 = vunpack.c.h.b16 %v73
    %v259 = vunpack.c.l.b16 %v74
    %v260 = vunpack.c.h.b16 %v74
    %v261 = vunpack.c.l.b16 %v75
    %v262 = vunpack.c.h.b16 %v75
    %v263 = vunpack.c.l.b16 %v76
    %v264 = vunpack.c.h.b16 %v76
    %v265 = vunpack.c.l.b16 %v77
    %v266 = vunpack.c.h.b16 %v77
    %v267 = vunpack.c.l.b16 %v78
    %v268 = vunpack.c.h.b16 %v78
    %v269 = vunpack.c.l.b16 %v79
    %v270 = vunpack.c.h.b16 %v79
    %v271 = vunpack.c.l.b16 %v80
    %v272 = vunpack.c.h.b16 %v80
    %v273 = vunpack.c.l.b16 %v81
    %v274 = vunpack.c.h.b16 %v81
    %v275 = vunpack.c.l.b16 %v82
    %v276 = vunpack.c.h.b16 %v82
    %v277 = vunpack.c.l.b16 %v83
    %v278 = vunpack.c.h.b16 %v83
    %v279 = vunpack.c.l.b16 %v84
    %v280 = vunpack.c.h.b16 %v84
    %v281 = vunpack.c.l.b16 %v85
    %v282 = vunpack.c.h.b16 %v85
    %v283 = vunpack.c.l.b16 %v86
    %v284 = vunpack.c.h.b16 %v86
    %v285 = vunpack.c.l.b16 %v87
    %v286 = vunpack.c.h.b16 %v87
    %v287 = vunpack.c.l.b16 %v88
    %v288 = vunpack.c.h.b16 %v88
    %v289 = vunpack.c.l.b16 %v89
    %v290 = vunpack.c.h.b16 %v89
    %v291 = vunpack.c.l.b16 %v90
    %v292 = vunpack.c.h.b16 %v90
    %v293 = vunpack.c.l.b16 %v91
    %v294 = vunpack.c.h.b16 %v91
    %v295 = vunpack.c.l.b16 %v92
    %v296 = vunpack.c.h.b16 %v92
    %v297 = vunpack.c.l.b16 %v93
    %v298 = vunpack.c.h.b16 %v93
    %v299 = vunpack.c.l.b16 %v94
    %v300 = vunpack.c.h.b16 %v94
    %v301 = vunpack.c.l.b16 %v95
    %v302 = vunpack.c.h.b16 %v95
    %v303 = vunpack.c.l.b16 %v96
    %v304 = vunpack.c.h.b16 %v96
    %v305 = vunpack.c.l.b16 %v97
    %v306 = vunpack.c.h.b16 %v97
    %v307 = vunpack.c.l.b16 %v98
    %v308 = vunpack.c.h.b16 %v98
    %v309 = vunpack.c.l.b16 %v99
    %v310 = vunpack.c.h.b16 %v99
    %v311 = vunpack.c.l.b16 %v100
    %v312 = vunpack.c.h.b16 %v100
    %v313 = vunpack.c.l.b16 %v101
    %v314 = vunpack.c.h.b16 %v101
    %v315 = vunpack.c.l.b16 %v102
    %v316 = vunpack.c.h.b16 %v102
    %v317 = vunpack.c.l.b16 %v103
    %v318 = vunpack.c.h.b16 %v103
    %v319 = vunpack.c.l.b16 %v104
    %v320 = vunpack.c.h.b16 %v104
    %v321 = vunpack.c.l.b16 %v105
    %v322 = vunpack.c.h.b16 %v105
    %v323 = vunpack.c.l.b16 %v106
    %v324 = vunpack.c.h.b16 %v106
    %v325 = vunpack.c.l.b16 %v107
    %v326 = vunpack.c.h.b16 %v107
    %v327 = vunpack.c.l.b16 %v108
    %v328 = vunpack.c.h.b16 %v108
    %v329 = vunpack.c.l.b16 %v109
    %v330 = vunpack.c.h.b16 %v109
    %v331 = vunpack.c.l.b16 %v110
    %v332 = vunpack.c.h.b16 %v110
    %v333 = vunpack.c.l.b16 %v111
    %v334 = vunpack.c.h.b16 %v111
    %v335 = vunpack.c.l.b16 %v112
    %v336 = vunpack.c.h.b16 %v112
    %v337 = vpack.c.b16 %v211, %v209
    %v338 = vpack.c.b16 %v212, %v210
    %v339 = vpack.c.b16 %v215, %v213
    %v340 = vpack.c.b16 %v216, %v214
    %v341 = vpack.c.b16 %v219, %v217
    %v342 = vpack.c.b16 %v220, %v218
    %v343 = vpack.c.b16 %v223, %v221
    %v344 = vpack.c.b16 %v224, %v222
    %v345 = vpack.c.b16 %v227, %v225
    %v346 = vpack.c.b16 %v228, %v226
    %v347 = vpack.c.b16 %v231, %v229
    %v348 = vpack.c.b16 %v232, %v230
    %v349 = vpack.c.b16 %v235, %v233
    %v350 = vpack.c.b16 %v236, %v234
    %v351 = vpack.c.b16 %v239, %v237
    %v352 = vpack.c.b16 %v240, %v238
    %v353 = vpack.c.b16 %v243, %v241
    %v354 = vpack.c.b16 %v244, %v242
    %v355 = vpack.c.b16 %v247, %v245
    %v356 = vpack.c.b16 %v248, %v246
    %v357 = vpack.c.b16 %v251, %v249
    %v358 = vpack.c.b16 %v252, %v250
    %v359 = vpack.c.b16 %v255, %v253
    %v360 = vpack.c.b16 %v256, %v254
    %v361 = vpack.c.b16 %v259, %v257
    %v362 = vpack.c.b16 %v260, %v258
    %v363 = vpack.c.b16 %v263, %v261
    %v364 = vpack.c.b16 %v264, %v262
    %v365 = vpack.c.b16 %v267, %v265
    %v366 = vpack.c.b16 %v268, %v266
    %v367 = vpack.c.b16 %v271, %v269
    %v368 = vpack.c.b16 %v272, %v270
    %v369 = vpack.c.b16 %v275, %v273
    %v370 = vpack.c.b16 %v276, %v274
    %v371 = vpack.c.b16 %v279, %v277
    %v372 = vpack.c.b16 %v280, %v278
    %v373 = vpack.c.b16 %v283, %v281
    %v374 = vpack.c.b16 %v284, %v282
    %v375 = vpack.c.b16 %v287, %v285
    %v376 = vpack.c.b16 %v288, %v286
    %v377 = vpack.c.b16 %v291, %v289
    %v378 = vpack.c.b16 %v292, %v290
    %v379 = vpack.c.b16 %v295, %v293
    %v380 = vpack.c.b16 %v296, %v294
    %v381 = vpack.c.b16 %v299, %v297
    %v382 = vpack.c.b16 %v300, %v298
    %v383 = vpack.c.b16 %v303, %v301
    %v384 = vpack.c.b16 %v304, %v302
    %v385 = vpack.c.b16 %v307, %v305
    %v386 = vpack.c.b16 %v308, %v306
    %v387 = vpack.c.b16 %v311, %v309
    %v388 = vpack.c.b16 %v312, %v310
    %v389 = vpack.c.b16 %v315, %v313
    %v390 = vpack.c.b16 %v316, %v314
    %v391 = vpack.c.b16 %v319, %v317
    %v392 = vpack.c.b16 %v320, %v318
    %v393 = vpack.c.b16 %v323, %v321
    %v394 = vpack.c.b16 %v324, %v322
    %v395 = vpack.c.b16 %v327, %v325
    %v396 = vpack.c.b16 %v328, %v326
    %v397 = vpack.c.b16 %v331, %v329
    %v398 = vpack.c.b16 %v332, %v330
    %v399 = vpack.c.b16 %v335, %v333
    %v400 = vpack.c.b16 %v336, %v334
    %v497 = vunpack.c.l.b16 %v113
    %v498 = vunpack.c.l.b16 %v114
    %v499 = vunpack.c.l.b16 %v115
    %v500 = vunpack.c.l.b16 %v116
    %v501 = vunpack.c.l.b16 %v117
    %v502 = vunpack.c.l.b16 %v118
    %v503 = vunpack.c.l.b16 %v119
    %v504 = vunpack.c.l.b16 %v120
    %v505 = vunpack.c.l.b16 %v121
    %v506 = vunpack.c.l.b16 %v122
    %v507 = vunpack.c.l.b16 %v123
    %v508 = vunpack.c.l.b16 %v124
    %v509 = vunpack.c.l.b16 %v125
    %v510 = vunpack.c.l.b16 %v126
    %v511 = vunpack.c.l.b16 %v127
    %v512 = vunpack.c.l.b16 %v128
    %v513 = vunpack.c.l.b16 %v129
    %v514 = vunpack.c.l.b16 %v130
    %v515 = vunpack.c.l.b16 %v131
    %v516 = vunpack.c.l.b16 %v132
    %v517 = vunpack.c.l.b16 %v133
    %v518 = vunpack.c.l.b16 %v134
    %v519 = vunpack.c.l.b16 %v135
    %v520 = vunpack.c.l.b16 %v136
    %v521 = vunpack.c.l.b16 %v137
    %v522 = vunpack.c.l.b16 %v138
    %v523 = vunpack.c.l.b16 %v139
    %v524 = vunpack.c.l.b16 %v140
    %v525 = vunpack.c.l.b16 %v141
    %v526 = vunpack.c.l.b16 %v142
    %v527 = vunpack.c.l.b16 %v143
    %v528 = vunpack.c.l.b16 %v144
    %v529 = vpack.c.b16 %v498, %v497
    %v530 = vpack.c.b16 %v500, %v499
    %v531 = vpack.c.b16 %v502, %v501
    %v532 = vpack.c.b16 %v504, %v503
    %v533 = vpack.c.b16 %v506, %v505
    %v534 = vpack.c.b16 %v508, %v507
    %v535 = vpack.c.b16 %v510, %v509
    %v536 = vpack.c.b16 %v512, %v511
    %v537 = vpack.c.b16 %v514, %v513
    %v538 = vpack.c.b16 %v516, %v515
    %v539 = vpack.c.b16 %v518, %v517
    %v540 = vpack.c.b16 %v520, %v519
    %v541 = vpack.c.b16 %v522, %v521
    %v542 = vpack.c.b16 %v524, %v523
    %v543 = vpack.c.b16 %v526, %v525
    %v544 = vpack.c.b16 %v528, %v527
    %561 = vmatprep.subr.bf16.mxu0 0
    %562 = vmatpush1.bf16.msra.mxu0 %v536
    %563 = vmatprep.subr.bf16.mxu0 0
    %564 = vmatpush1.bf16.msra.mxu0 %v535
    %565 = vmatprep.subr.bf16.mxu0 0
    %566 = vmatpush1.bf16.msra.mxu0 %v534
    %567 = vmatprep.subr.bf16.mxu0 0
    %568 = vmatpush1.bf16.msra.mxu0 %v533
    %569 = vmatprep.subr.bf16.mxu0 0
    %570 = vmatpush1.bf16.msra.mxu0 %v532
    %571 = vmatprep.subr.bf16.mxu0 0
    %572 = vmatpush1.bf16.msra.mxu0 %v531
    %573 = vmatprep.subr.bf16.mxu0 0
    %574 = vmatpush1.bf16.msra.mxu0 %v530
    %575 = vmatprep.subr.bf16.mxu0 0
    %576 = vmatpush1.bf16.msra.mxu0 %v529
    %577 = vmatprep.subr.bf16.mxu0 0
    %578 = vmatpush2.bf16.msra.mxu0 %v544
    %579 = vmatprep.subr.bf16.mxu0 0
    %580 = vmatpush2.bf16.msra.mxu0 %v543
    %581 = vmatprep.subr.bf16.mxu0 0
    %582 = vmatpush2.bf16.msra.mxu0 %v542
    %583 = vmatprep.subr.bf16.mxu0 0
    %584 = vmatpush2.bf16.msra.mxu0 %v541
    %585 = vmatprep.subr.bf16.mxu0 0
    %586 = vmatpush2.bf16.msra.mxu0 %v540
    %587 = vmatprep.subr.bf16.mxu0 0
    %588 = vmatpush2.bf16.msra.mxu0 %v539
    %589 = vmatprep.subr.bf16.mxu0 0
    %590 = vmatpush2.bf16.msra.mxu0 %v538
    %591 = vmatprep.subr.bf16.mxu0 0
    %592 = vmatpush2.bf16.msra.mxu0 %v537
    %593 = vmatprep.mubr.bf16.mxu0 %v338
    %594 = vmatmul.mubr.bf16.gmra.mxu0 %v337
    %v595 = vpop.f32.mrf.mxu0
    %v596 = vadd.f32 0.0, %v595
    %v597 = vpop.f32.mrf.mxu0
    %v598 = vpop.f32.mrf.mxu0
    %v599 = vadd.f32 0.0, %v598
    %v600 = vpop.f32.mrf.mxu0
    %601 = vmatprep.mubr.bf16.mxu0 %v340
    %602 = vmatmul.mubr.bf16.gmra.mxu0 %v339
    %v603 = vpop.f32.mrf.mxu0
    %v604 = vadd.f32 0.0, %v603
    %v605 = vpop.f32.mrf.mxu0
    %v606 = vpop.f32.mrf.mxu0
    %v607 = vadd.f32 0.0, %v606
    %v608 = vpop.f32.mrf.mxu0
    %609 = vmatprep.mubr.bf16.mxu0 %v342
    %610 = vmatmul.mubr.bf16.gmra.mxu0 %v341
    %v611 = vpop.f32.mrf.mxu0
    %v612 = vadd.f32 0.0, %v611
    %v613 = vpop.f32.mrf.mxu0
    %v614 = vpop.f32.mrf.mxu0
    %v615 = vadd.f32 0.0, %v614
    %v616 = vpop.f32.mrf.mxu0
    %617 = vmatprep.mubr.bf16.mxu0 %v344
    %618 = vmatmul.mubr.bf16.gmra.mxu0 %v343
    %v619 = vpop.f32.mrf.mxu0
    %v620 = vadd.f32 0.0, %v619
    %v621 = vpop.f32.mrf.mxu0
    %v622 = vpop.f32.mrf.mxu0
    %v623 = vadd.f32 0.0, %v622
    %v624 = vpop.f32.mrf.mxu0
    %625 = vmatprep.mubr.bf16.mxu0 %v346
    %626 = vmatmul.mubr.bf16.gmra.mxu0 %v345
    %v627 = vpop.f32.mrf.mxu0
    %v628 = vadd.f32 0.0, %v627
    %v629 = vpop.f32.mrf.mxu0
    %v630 = vpop.f32.mrf.mxu0
    %v631 = vadd.f32 0.0, %v630
    %v632 = vpop.f32.mrf.mxu0
    %633 = vmatprep.mubr.bf16.mxu0 %v348
    %634 = vmatmul.mubr.bf16.gmra.mxu0 %v347
    %v635 = vpop.f32.mrf.mxu0
    %v636 = vadd.f32 0.0, %v635
    %v637 = vpop.f32.mrf.mxu0
    %v638 = vpop.f32.mrf.mxu0
    %v639 = vadd.f32 0.0, %v638
    %v640 = vpop.f32.mrf.mxu0
    %641 = vmatprep.mubr.bf16.mxu0 %v350
    %642 = vmatmul.mubr.bf16.gmra.mxu0 %v349
    %v643 = vpop.f32.mrf.mxu0
    %v644 = vadd.f32 0.0, %v643
    %v645 = vpop.f32.mrf.mxu0
    %v646 = vpop.f32.mrf.mxu0
    %v647 = vadd.f32 0.0, %v646
    %v648 = vpop.f32.mrf.mxu0
    %649 = vmatprep.mubr.bf16.mxu0 %v352
    %650 = vmatmul.mubr.bf16.gmra.mxu0 %v351
    %v651 = vpop.f32.mrf.mxu0
    %v652 = vadd.f32 0.0, %v651
    %v653 = vpop.f32.mrf.mxu0
    %v654 = vpop.f32.mrf.mxu0
    %v655 = vadd.f32 0.0, %v654
    %v656 = vpop.f32.mrf.mxu0
    %657 = vmatprep.mubr.bf16.mxu0 %v354
    %658 = vmatmul.mubr.bf16.gmra.mxu0 %v353
    %v659 = vpop.f32.mrf.mxu0
    %v660 = vadd.f32 0.0, %v659
    %v661 = vpop.f32.mrf.mxu0
    %v662 = vpop.f32.mrf.mxu0
    %v663 = vadd.f32 0.0, %v662
    %v664 = vpop.f32.mrf.mxu0
    %665 = vmatprep.mubr.bf16.mxu0 %v356
    %666 = vmatmul.mubr.bf16.gmra.mxu0 %v355
    %v667 = vpop.f32.mrf.mxu0
    %v668 = vadd.f32 0.0, %v667
    %v669 = vpop.f32.mrf.mxu0
    %v670 = vpop.f32.mrf.mxu0
    %v671 = vadd.f32 0.0, %v670
    %v672 = vpop.f32.mrf.mxu0
    %673 = vmatprep.mubr.bf16.mxu0 %v358
    %674 = vmatmul.mubr.bf16.gmra.mxu0 %v357
    %v675 = vpop.f32.mrf.mxu0
    %v676 = vadd.f32 0.0, %v675
    %v677 = vpop.f32.mrf.mxu0
    %v678 = vpop.f32.mrf.mxu0
    %v679 = vadd.f32 0.0, %v678
    %v680 = vpop.f32.mrf.mxu0
    %681 = vmatprep.mubr.bf16.mxu0 %v360
    %682 = vmatmul.mubr.bf16.gmra.mxu0 %v359
    %v683 = vpop.f32.mrf.mxu0
    %v684 = vadd.f32 0.0, %v683
    %v685 = vpop.f32.mrf.mxu0
    %v686 = vpop.f32.mrf.mxu0
    %v687 = vadd.f32 0.0, %v686
    %v688 = vpop.f32.mrf.mxu0
    %689 = vmatprep.mubr.bf16.mxu0 %v362
    %690 = vmatmul.mubr.bf16.gmra.mxu0 %v361
    %v691 = vpop.f32.mrf.mxu0
    %v692 = vadd.f32 0.0, %v691
    %v693 = vpop.f32.mrf.mxu0
    %v694 = vpop.f32.mrf.mxu0
    %v695 = vadd.f32 0.0, %v694
    %v696 = vpop.f32.mrf.mxu0
    %697 = vmatprep.mubr.bf16.mxu0 %v364
    %698 = vmatmul.mubr.bf16.gmra.mxu0 %v363
    %v699 = vpop.f32.mrf.mxu0
    %v700 = vadd.f32 0.0, %v699
    %v701 = vpop.f32.mrf.mxu0
    %v702 = vpop.f32.mrf.mxu0
    %v703 = vadd.f32 0.0, %v702
    %v704 = vpop.f32.mrf.mxu0
    %705 = vmatprep.mubr.bf16.mxu0 %v366
    %706 = vmatmul.mubr.bf16.gmra.mxu0 %v365
    %v707 = vpop.f32.mrf.mxu0
    %v708 = vadd.f32 0.0, %v707
    %v709 = vpop.f32.mrf.mxu0
    %v710 = vpop.f32.mrf.mxu0
    %v711 = vadd.f32 0.0, %v710
    %v712 = vpop.f32.mrf.mxu0
    %713 = vmatprep.mubr.bf16.mxu0 %v368
    %714 = vmatmul.mubr.bf16.gmra.mxu0 %v367
    %v715 = vpop.f32.mrf.mxu0
    %v716 = vadd.f32 0.0, %v715
    %v717 = vpop.f32.mrf.mxu0
    %v718 = vpop.f32.mrf.mxu0
    %v719 = vadd.f32 0.0, %v718
    %v720 = vpop.f32.mrf.mxu0
    %721 = vmatprep.mubr.bf16.mxu0 %v370
    %722 = vmatmul.mubr.bf16.gmra.mxu0 %v369
    %v723 = vpop.f32.mrf.mxu0
    %v724 = vadd.f32 0.0, %v723
    %v725 = vpop.f32.mrf.mxu0
    %v726 = vpop.f32.mrf.mxu0
    %v727 = vadd.f32 0.0, %v726
    %v728 = vpop.f32.mrf.mxu0
    %729 = vmatprep.mubr.bf16.mxu0 %v372
    %730 = vmatmul.mubr.bf16.gmra.mxu0 %v371
    %v731 = vpop.f32.mrf.mxu0
    %v732 = vadd.f32 0.0, %v731
    %v733 = vpop.f32.mrf.mxu0
    %v734 = vpop.f32.mrf.mxu0
    %v735 = vadd.f32 0.0, %v734
    %v736 = vpop.f32.mrf.mxu0
    %737 = vmatprep.mubr.bf16.mxu0 %v374
    %738 = vmatmul.mubr.bf16.gmra.mxu0 %v373
    %v739 = vpop.f32.mrf.mxu0
    %v740 = vadd.f32 0.0, %v739
    %v741 = vpop.f32.mrf.mxu0
    %v742 = vpop.f32.mrf.mxu0
    %v743 = vadd.f32 0.0, %v742
    %v744 = vpop.f32.mrf.mxu0
    %745 = vmatprep.mubr.bf16.mxu0 %v376
    %746 = vmatmul.mubr.bf16.gmra.mxu0 %v375
    %v747 = vpop.f32.mrf.mxu0
    %v748 = vadd.f32 0.0, %v747
    %v749 = vpop.f32.mrf.mxu0
    %v750 = vpop.f32.mrf.mxu0
    %v751 = vadd.f32 0.0, %v750
    %v752 = vpop.f32.mrf.mxu0
    %753 = vmatprep.mubr.bf16.mxu0 %v378
    %754 = vmatmul.mubr.bf16.gmra.mxu0 %v377
    %v755 = vpop.f32.mrf.mxu0
    %v756 = vadd.f32 0.0, %v755
    %v757 = vpop.f32.mrf.mxu0
    %v758 = vpop.f32.mrf.mxu0
    %v759 = vadd.f32 0.0, %v758
    %v760 = vpop.f32.mrf.mxu0
    %761 = vmatprep.mubr.bf16.mxu0 %v380
    %762 = vmatmul.mubr.bf16.gmra.mxu0 %v379
    %v763 = vpop.f32.mrf.mxu0
    %v764 = vadd.f32 0.0, %v763
    %v765 = vpop.f32.mrf.mxu0
    %v766 = vpop.f32.mrf.mxu0
    %v767 = vadd.f32 0.0, %v766
    %v768 = vpop.f32.mrf.mxu0
    %769 = vmatprep.mubr.bf16.mxu0 %v382
    %770 = vmatmul.mubr.bf16.gmra.mxu0 %v381
    %v771 = vpop.f32.mrf.mxu0
    %v772 = vadd.f32 0.0, %v771
    %v773 = vpop.f32.mrf.mxu0
    %v774 = vpop.f32.mrf.mxu0
    %v775 = vadd.f32 0.0, %v774
    %v776 = vpop.f32.mrf.mxu0
    %777 = vmatprep.mubr.bf16.mxu0 %v384
    %778 = vmatmul.mubr.bf16.gmra.mxu0 %v383
    %v779 = vpop.f32.mrf.mxu0
    %v780 = vadd.f32 0.0, %v779
    %v781 = vpop.f32.mrf.mxu0
    %v782 = vpop.f32.mrf.mxu0
    %v783 = vadd.f32 0.0, %v782
    %v784 = vpop.f32.mrf.mxu0
    %785 = vmatprep.mubr.bf16.mxu0 %v386
    %786 = vmatmul.mubr.bf16.gmra.mxu0 %v385
    %v787 = vpop.f32.mrf.mxu0
    %v788 = vadd.f32 0.0, %v787
    %v789 = vpop.f32.mrf.mxu0
    %v790 = vpop.f32.mrf.mxu0
    %v791 = vadd.f32 0.0, %v790
    %v792 = vpop.f32.mrf.mxu0
    %793 = vmatprep.mubr.bf16.mxu0 %v388
    %794 = vmatmul.mubr.bf16.gmra.mxu0 %v387
    %v795 = vpop.f32.mrf.mxu0
    %v796 = vadd.f32 0.0, %v795
    %v797 = vpop.f32.mrf.mxu0
    %v798 = vpop.f32.mrf.mxu0
    %v799 = vadd.f32 0.0, %v798
    %v800 = vpop.f32.mrf.mxu0
    %801 = vmatprep.mubr.bf16.mxu0 %v390
    %802 = vmatmul.mubr.bf16.gmra.mxu0 %v389
    %v803 = vpop.f32.mrf.mxu0
    %v804 = vadd.f32 0.0, %v803
    %v805 = vpop.f32.mrf.mxu0
    %v806 = vpop.f32.mrf.mxu0
    %v807 = vadd.f32 0.0, %v806
    %v808 = vpop.f32.mrf.mxu0
    %809 = vmatprep.mubr.bf16.mxu0 %v392
    %810 = vmatmul.mubr.bf16.gmra.mxu0 %v391
    %v811 = vpop.f32.mrf.mxu0
    %v812 = vadd.f32 0.0, %v811
    %v813 = vpop.f32.mrf.mxu0
    %v814 = vpop.f32.mrf.mxu0
    %v815 = vadd.f32 0.0, %v814
    %v816 = vpop.f32.mrf.mxu0
    %817 = vmatprep.mubr.bf16.mxu0 %v394
    %818 = vmatmul.mubr.bf16.gmra.mxu0 %v393
    %v819 = vpop.f32.mrf.mxu0
    %v820 = vadd.f32 0.0, %v819
    %v821 = vpop.f32.mrf.mxu0
    %v822 = vpop.f32.mrf.mxu0
    %v823 = vadd.f32 0.0, %v822
    %v824 = vpop.f32.mrf.mxu0
    %825 = vmatprep.mubr.bf16.mxu0 %v396
    %826 = vmatmul.mubr.bf16.gmra.mxu0 %v395
    %v827 = vpop.f32.mrf.mxu0
    %v828 = vadd.f32 0.0, %v827
    %v829 = vpop.f32.mrf.mxu0
    %v830 = vpop.f32.mrf.mxu0
    %v831 = vadd.f32 0.0, %v830
    %v832 = vpop.f32.mrf.mxu0
    %833 = vmatprep.mubr.bf16.mxu0 %v398
    %834 = vmatmul.mubr.bf16.gmra.mxu0 %v397
    %v835 = vpop.f32.mrf.mxu0
    %v836 = vadd.f32 0.0, %v835
    %v837 = vpop.f32.mrf.mxu0
    %v838 = vpop.f32.mrf.mxu0
    %v839 = vadd.f32 0.0, %v838
    %v840 = vpop.f32.mrf.mxu0
    %841 = vmatprep.mubr.bf16.mxu0 %v400
    %842 = vmatmul.mubr.bf16.gmra.mxu0 %v399
    %v843 = vpop.f32.mrf.mxu0
    %v844 = vadd.f32 0.0, %v843
    %v845 = vpop.f32.mrf.mxu0
    %v846 = vpop.f32.mrf.mxu0
    %v847 = vadd.f32 0.0, %v846
    %v848 = vpop.f32.mrf.mxu0
    %849 = vdwg.mxu0
    %v850 = vpack.c.bf16 %v599, %v596
    %v851 = vpack.c.bf16 %v607, %v604
    %v852 = vpack.c.bf16 %v615, %v612
    %v853 = vpack.c.bf16 %v623, %v620
    %v854 = vpack.c.bf16 %v631, %v628
    %v855 = vpack.c.bf16 %v639, %v636
    %v856 = vpack.c.bf16 %v647, %v644
    %v857 = vpack.c.bf16 %v655, %v652
    %v858 = vpack.c.bf16 %v663, %v660
    %v859 = vpack.c.bf16 %v671, %v668
    %v860 = vpack.c.bf16 %v679, %v676
    %v861 = vpack.c.bf16 %v687, %v684
    %v862 = vpack.c.bf16 %v695, %v692
    %v863 = vpack.c.bf16 %v703, %v700
    %v864 = vpack.c.bf16 %v711, %v708
    %v865 = vpack.c.bf16 %v719, %v716
    %v866 = vpack.c.bf16 %v727, %v724
    %v867 = vpack.c.bf16 %v735, %v732
    %v868 = vpack.c.bf16 %v743, %v740
    %v869 = vpack.c.bf16 %v751, %v748
    %v870 = vpack.c.bf16 %v759, %v756
    %v871 = vpack.c.bf16 %v767, %v764
    %v872 = vpack.c.bf16 %v775, %v772
    %v873 = vpack.c.bf16 %v783, %v780
    %v874 = vpack.c.bf16 %v791, %v788
    %v875 = vpack.c.bf16 %v799, %v796
    %v876 = vpack.c.bf16 %v807, %v804
    %v877 = vpack.c.bf16 %v815, %v812
    %v878 = vpack.c.bf16 %v823, %v820
    %v879 = vpack.c.bf16 %v831, %v828
    %v880 = vpack.c.bf16 %v839, %v836
    %v881 = vpack.c.bf16 %v847, %v844
    %v914 = vunpack.c.l.b16 %v850
    %v915 = vunpack.c.h.b16 %v850
    %v916 = vunpack.c.l.b16 %v851
    %v917 = vunpack.c.h.b16 %v851
    %v918 = vunpack.c.l.b16 %v852
    %v919 = vunpack.c.h.b16 %v852
    %v920 = vunpack.c.l.b16 %v853
    %v921 = vunpack.c.h.b16 %v853
    %v922 = vunpack.c.l.b16 %v854
    %v923 = vunpack.c.h.b16 %v854
    %v924 = vunpack.c.l.b16 %v855
    %v925 = vunpack.c.h.b16 %v855
    %v926 = vunpack.c.l.b16 %v856
    %v927 = vunpack.c.h.b16 %v856
    %v928 = vunpack.c.l.b16 %v857
    %v929 = vunpack.c.h.b16 %v857
    %v930 = vunpack.c.l.b16 %v858
    %v931 = vunpack.c.h.b16 %v858
    %v932 = vunpack.c.l.b16 %v859
    %v933 = vunpack.c.h.b16 %v859
    %v934 = vunpack.c.l.b16 %v860
    %v935 = vunpack.c.h.b16 %v860
    %v936 = vunpack.c.l.b16 %v861
    %v937 = vunpack.c.h.b16 %v861
    %v938 = vunpack.c.l.b16 %v862
    %v939 = vunpack.c.h.b16 %v862
    %v940 = vunpack.c.l.b16 %v863
    %v941 = vunpack.c.h.b16 %v863
    %v942 = vunpack.c.l.b16 %v864
    %v943 = vunpack.c.h.b16 %v864
    %v944 = vunpack.c.l.b16 %v865
    %v945 = vunpack.c.h.b16 %v865
    %v946 = vunpack.c.l.b16 %v866
    %v947 = vunpack.c.h.b16 %v866
    %v948 = vunpack.c.l.b16 %v867
    %v949 = vunpack.c.h.b16 %v867
    %v950 = vunpack.c.l.b16 %v868
    %v951 = vunpack.c.h.b16 %v868
    %v952 = vunpack.c.l.b16 %v869
    %v953 = vunpack.c.h.b16 %v869
    %v954 = vunpack.c.l.b16 %v870
    %v955 = vunpack.c.h.b16 %v870
    %v956 = vunpack.c.l.b16 %v871
    %v957 = vunpack.c.h.b16 %v871
    %v958 = vunpack.c.l.b16 %v872
    %v959 = vunpack.c.h.b16 %v872
    %v960 = vunpack.c.l.b16 %v873
    %v961 = vunpack.c.h.b16 %v873
    %v962 = vunpack.c.l.b16 %v874
    %v963 = vunpack.c.h.b16 %v874
    %v964 = vunpack.c.l.b16 %v875
    %v965 = vunpack.c.h.b16 %v875
    %v966 = vunpack.c.l.b16 %v876
    %v967 = vunpack.c.h.b16 %v876
    %v968 = vunpack.c.l.b16 %v877
    %v969 = vunpack.c.h.b16 %v877
    %v970 = vunpack.c.l.b16 %v878
    %v971 = vunpack.c.h.b16 %v878
    %v972 = vunpack.c.l.b16 %v879
    %v973 = vunpack.c.h.b16 %v879
    %v974 = vunpack.c.l.b16 %v880
    %v975 = vunpack.c.h.b16 %v880
    %v976 = vunpack.c.l.b16 %v881
    %v977 = vunpack.c.h.b16 %v881
    %v978 = vpack.c.b16 %v914, %v914
    %v979 = vpack.c.b16 %v915, %v915
    %v980 = vpack.c.b16 %v916, %v916
    %v981 = vpack.c.b16 %v917, %v917
    %v982 = vpack.c.b16 %v918, %v918
    %v983 = vpack.c.b16 %v919, %v919
    %v984 = vpack.c.b16 %v920, %v920
    %v985 = vpack.c.b16 %v921, %v921
    %v986 = vpack.c.b16 %v922, %v922
    %v987 = vpack.c.b16 %v923, %v923
    %v988 = vpack.c.b16 %v924, %v924
    %v989 = vpack.c.b16 %v925, %v925
    %v990 = vpack.c.b16 %v926, %v926
    %v991 = vpack.c.b16 %v927, %v927
    %v992 = vpack.c.b16 %v928, %v928
    %v993 = vpack.c.b16 %v929, %v929
    %v994 = vpack.c.b16 %v930, %v930
    %v995 = vpack.c.b16 %v931, %v931
    %v996 = vpack.c.b16 %v932, %v932
    %v997 = vpack.c.b16 %v933, %v933
    %v998 = vpack.c.b16 %v934, %v934
    %v999 = vpack.c.b16 %v935, %v935
    %v1000 = vpack.c.b16 %v936, %v936
    %v1001 = vpack.c.b16 %v937, %v937
    %v1002 = vpack.c.b16 %v938, %v938
    %v1003 = vpack.c.b16 %v939, %v939
    %v1004 = vpack.c.b16 %v940, %v940
    %v1005 = vpack.c.b16 %v941, %v941
    %v1006 = vpack.c.b16 %v942, %v942
    %v1007 = vpack.c.b16 %v943, %v943
    %v1008 = vpack.c.b16 %v944, %v944
    %v1009 = vpack.c.b16 %v945, %v945
    %v1010 = vpack.c.b16 %v946, %v946
    %v1011 = vpack.c.b16 %v947, %v947
    %v1012 = vpack.c.b16 %v948, %v948
    %v1013 = vpack.c.b16 %v949, %v949
    %v1014 = vpack.c.b16 %v950, %v950
    %v1015 = vpack.c.b16 %v951, %v951
    %v1016 = vpack.c.b16 %v952, %v952
    %v1017 = vpack.c.b16 %v953, %v953
    %v1018 = vpack.c.b16 %v954, %v954
    %v1019 = vpack.c.b16 %v955, %v955
    %v1020 = vpack.c.b16 %v956, %v956
    %v1021 = vpack.c.b16 %v957, %v957
    %v1022 = vpack.c.b16 %v958, %v958
    %v1023 = vpack.c.b16 %v959, %v959
    %v1024 = vpack.c.b16 %v960, %v960
    %v1025 = vpack.c.b16 %v961, %v961
    %v1026 = vpack.c.b16 %v962, %v962
    %v1027 = vpack.c.b16 %v963, %v963
    %v1028 = vpack.c.b16 %v964, %v964
    %v1029 = vpack.c.b16 %v965, %v965
    %v1030 = vpack.c.b16 %v966, %v966
    %v1031 = vpack.c.b16 %v967, %v967
    %v1032 = vpack.c.b16 %v968, %v968
    %v1033 = vpack.c.b16 %v969, %v969
    %v1034 = vpack.c.b16 %v970, %v970
    %v1035 = vpack.c.b16 %v971, %v971
    %v1036 = vpack.c.b16 %v972, %v972
    %v1037 = vpack.c.b16 %v973, %v973
    %v1038 = vpack.c.b16 %v974, %v974
    %v1039 = vpack.c.b16 %v975, %v975
    %v1040 = vpack.c.b16 %v976, %v976
    %v1041 = vpack.c.b16 %v977, %v977
    %1106 = vst [vmem:[#allocation7] sm:$0xf] %v978
    %1107 = vst [vmem:[#allocation7 + $0x4] sm:$0xf] %v979
    %1108 = vst [vmem:[#allocation7 + $0x8] sm:$0xf] %v980
    %1109 = vst [vmem:[#allocation7 + $0xc] sm:$0xf] %v981
    %1110 = vst [vmem:[#allocation7 + $0x10] sm:$0xf] %v982
    %1111 = vst [vmem:[#allocation7 + $0x14] sm:$0xf] %v983
    %1112 = vst [vmem:[#allocation7 + $0x18] sm:$0xf] %v984
    %1113 = vst [vmem:[#allocation7 + $0x1c] sm:$0xf] %v985
    %1114 = vst [vmem:[#allocation7 + $0x20] sm:$0xf] %v986
    %1115 = vst [vmem:[#allocation7 + $0x24] sm:$0xf] %v987
    %1116 = vst [vmem:[#allocation7 + $0x28] sm:$0xf] %v988
    %1117 = vst [vmem:[#allocation7 + $0x2c] sm:$0xf] %v989
    %1118 = vst [vmem:[#allocation7 + $0x30] sm:$0xf] %v990
    %1119 = vst [vmem:[#allocation7 + $0x34] sm:$0xf] %v991
    %1120 = vst [vmem:[#allocation7 + $0x38] sm:$0xf] %v992
    %1121 = vst [vmem:[#allocation7 + $0x3c] sm:$0xf] %v993
    %1122 = vst [vmem:[#allocation7 + $0x40] sm:$0xf] %v994
    %1123 = vst [vmem:[#allocation7 + $0x44] sm:$0xf] %v995
    %1124 = vst [vmem:[#allocation7 + $0x48] sm:$0xf] %v996
    %1125 = vst [vmem:[#allocation7 + $0x4c] sm:$0xf] %v997
    %1126 = vst [vmem:[#allocation7 + $0x50] sm:$0xf] %v998
    %1127 = vst [vmem:[#allocation7 + $0x54] sm:$0xf] %v999
    %1128 = vst [vmem:[#allocation7 + $0x58] sm:$0xf] %v1000
    %1129 = vst [vmem:[#allocation7 + $0x5c] sm:$0xf] %v1001
    %1130 = vst [vmem:[#allocation7 + $0x60] sm:$0xf] %v1002
    %1131 = vst [vmem:[#allocation7 + $0x64] sm:$0xf] %v1003
    %1132 = vst [vmem:[#allocation7 + $0x68] sm:$0xf] %v1004
    %1133 = vst [vmem:[#allocation7 + $0x6c] sm:$0xf] %v1005
    %1134 = vst [vmem:[#allocation7 + $0x70] sm:$0xf] %v1006
    %1135 = vst [vmem:[#allocation7 + $0x74] sm:$0xf] %v1007
    %1136 = vst [vmem:[#allocation7 + $0x78] sm:$0xf] %v1008
    %1137 = vst [vmem:[#allocation7 + $0x7c] sm:$0xf] %v1009
    %1138 = vst [vmem:[#allocation7 + $0x80] sm:$0xf] %v1010
    %1139 = vst [vmem:[#allocation7 + $0x84] sm:$0xf] %v1011
    %1140 = vst [vmem:[#allocation7 + $0x88] sm:$0xf] %v1012
    %1141 = vst [vmem:[#allocation7 + $0x8c] sm:$0xf] %v1013
    %1142 = vst [vmem:[#allocation7 + $0x90] sm:$0xf] %v1014
    %1143 = vst [vmem:[#allocation7 + $0x94] sm:$0xf] %v1015
    %1144 = vst [vmem:[#allocation7 + $0x98] sm:$0xf] %v1016
    %1145 = vst [vmem:[#allocation7 + $0x9c] sm:$0xf] %v1017
    %1146 = vst [vmem:[#allocation7 + $0xa0] sm:$0xf] %v1018
    %1147 = vst [vmem:[#allocation7 + $0xa4] sm:$0xf] %v1019
    %1148 = vst [vmem:[#allocation7 + $0xa8] sm:$0xf] %v1020
    %1149 = vst [vmem:[#allocation7 + $0xac] sm:$0xf] %v1021
    %1150 = vst [vmem:[#allocation7 + $0xb0] sm:$0xf] %v1022
    %1151 = vst [vmem:[#allocation7 + $0xb4] sm:$0xf] %v1023
    %1152 = vst [vmem:[#allocation7 + $0xb8] sm:$0xf] %v1024
    %1153 = vst [vmem:[#allocation7 + $0xbc] sm:$0xf] %v1025
    %1154 = vst [vmem:[#allocation7 + $0xc0] sm:$0xf] %v1026
    %1155 = vst [vmem:[#allocation7 + $0xc4] sm:$0xf] %v1027
    %1156 = vst [vmem:[#allocation7 + $0xc8] sm:$0xf] %v1028
    %1157 = vst [vmem:[#allocation7 + $0xcc] sm:$0xf] %v1029
    %1158 = vst [vmem:[#allocation7 + $0xd0] sm:$0xf] %v1030
    %1159 = vst [vmem:[#allocation7 + $0xd4] sm:$0xf] %v1031
    %1160 = vst [vmem:[#allocation7 + $0xd8] sm:$0xf] %v1032
    %1161 = vst [vmem:[#allocation7 + $0xdc] sm:$0xf] %v1033
    %1162 = vst [vmem:[#allocation7 + $0xe0] sm:$0xf] %v1034
    %1163 = vst [vmem:[#allocation7 + $0xe4] sm:$0xf] %v1035
    %1164 = vst [vmem:[#allocation7 + $0xe8] sm:$0xf] %v1036
    %1165 = vst [vmem:[#allocation7 + $0xec] sm:$0xf] %v1037
    %1166 = vst [vmem:[#allocation7 + $0xf0] sm:$0xf] %v1038
    %1167 = vst [vmem:[#allocation7 + $0xf4] sm:$0xf] %v1039
    %1168 = vst [vmem:[#allocation7 + $0xf8] sm:$0xf] %v1040
    %1169 = vst [vmem:[#allocation7 + $0xfc] sm:$0xf] %v1041
    %v1170 = vld [vmem:[#allocation8] sm:$0x3]
    %v1171 = vadd.f32 %v596, %v599
    %v1172 = vadd.f32 %v1171, %v604
    %v1173 = vadd.f32 %v1172, %v607
    %v1174 = vadd.f32 %v1173, %v612
    %v1175 = vadd.f32 %v1174, %v615
    %v1176 = vadd.f32 %v1175, %v620
    %v1177 = vadd.f32 %v1176, %v623
    %v1178 = vadd.f32 %v1177, %v628
    %v1179 = vadd.f32 %v1178, %v631
    %v1180 = vadd.f32 %v1179, %v636
    %v1181 = vadd.f32 %v1180, %v639
    %v1182 = vadd.f32 %v1181, %v644
    %v1183 = vadd.f32 %v1182, %v647
    %v1184 = vadd.f32 %v1183, %v652
    %v1185 = vadd.f32 %v1184, %v655
    %v1186 = vadd.f32 %v1185, %v660
    %v1187 = vadd.f32 %v1186, %v663
    %v1188 = vadd.f32 %v1187, %v668
    %v1189 = vadd.f32 %v1188, %v671
    %v1190 = vadd.f32 %v1189, %v676
    %v1191 = vadd.f32 %v1190, %v679
    %v1192 = vadd.f32 %v1191, %v684
    %v1193 = vadd.f32 %v1192, %v687
    %v1194 = vadd.f32 %v1193, %v692
    %v1195 = vadd.f32 %v1194, %v695
    %v1196 = vadd.f32 %v1195, %v700
    %v1197 = vadd.f32 %v1196, %v703
    %v1198 = vadd.f32 %v1197, %v708
    %v1199 = vadd.f32 %v1198, %v711
    %v1200 = vadd.f32 %v1199, %v716
    %v1201 = vadd.f32 %v1200, %v719
    %v1202 = vadd.f32 %v1201, %v724
    %v1203 = vadd.f32 %v1202, %v727
    %v1204 = vadd.f32 %v1203, %v732
    %v1205 = vadd.f32 %v1204, %v735
    %v1206 = vadd.f32 %v1205, %v740
    %v1207 = vadd.f32 %v1206, %v743
    %v1208 = vadd.f32 %v1207, %v748
    %v1209 = vadd.f32 %v1208, %v751
    %v1210 = vadd.f32 %v1209, %v756
    %v1211 = vadd.f32 %v1210, %v759
    %v1212 = vadd.f32 %v1211, %v764
    %v1213 = vadd.f32 %v1212, %v767
    %v1214 = vadd.f32 %v1213, %v772
    %v1215 = vadd.f32 %v1214, %v775
    %v1216 = vadd.f32 %v1215, %v780
    %v1217 = vadd.f32 %v1216, %v783
    %v1218 = vadd.f32 %v1217, %v788
    %v1219 = vadd.f32 %v1218, %v791
    %v1220 = vadd.f32 %v1219, %v796
    %v1221 = vadd.f32 %v1220, %v799
    %v1222 = vadd.f32 %v1221, %v804
    %v1223 = vadd.f32 %v1222, %v807
    %v1224 = vadd.f32 %v1223, %v812
    %v1225 = vadd.f32 %v1224, %v815
    %v1226 = vadd.f32 %v1225, %v820
    %v1227 = vadd.f32 %v1226, %v823
    %v1228 = vadd.f32 %v1227, %v828
    %v1229 = vadd.f32 %v1228, %v831
    %v1230 = vadd.f32 %v1229, %v836
    %v1231 = vadd.f32 %v1230, %v839
    %v1232 = vadd.f32 %v1231, %v844
    %v1233 = vadd.f32 %v1232, %v847
    %v1234 = vrot.slane %v1233, 4
    %v1235 = vadd.f32 %v1233, %v1234
    %v1236 = vrot.slane %v1235, 2
    %v1237 = vadd.f32 %v1235, %v1236
    %v1238 = vrot.slane %v1237, 1
    %v1239 = vadd.f32 %v1237, %v1238
    %v1240 = vmul.f32 %v596, %v596
    %v1241 = vmul.f32 %v599, %v599
    %v1242 = vmul.f32 %v604, %v604
    %v1243 = vmul.f32 %v607, %v607
    %v1244 = vmul.f32 %v612, %v612
    %v1245 = vmul.f32 %v615, %v615
    %v1246 = vmul.f32 %v620, %v620
    %v1247 = vmul.f32 %v623, %v623
    %v1248 = vmul.f32 %v628, %v628
    %v1249 = vmul.f32 %v631, %v631
    %v1250 = vmul.f32 %v636, %v636
    %v1251 = vmul.f32 %v639, %v639
    %v1252 = vmul.f32 %v644, %v644
    %v1253 = vmul.f32 %v647, %v647
    %v1254 = vmul.f32 %v652, %v652
    %v1255 = vmul.f32 %v655, %v655
    %v1256 = vmul.f32 %v660, %v660
    %v1257 = vmul.f32 %v663, %v663
    %v1258 = vmul.f32 %v668, %v668
    %v1259 = vmul.f32 %v671, %v671
    %v1260 = vmul.f32 %v676, %v676
    %v1261 = vmul.f32 %v679, %v679
    %v1262 = vmul.f32 %v684, %v684
    %v1263 = vmul.f32 %v687, %v687
    %v1264 = vmul.f32 %v692, %v692
    %v1265 = vmul.f32 %v695, %v695
    %v1266 = vmul.f32 %v700, %v700
    %v1267 = vmul.f32 %v703, %v703
    %v1268 = vmul.f32 %v708, %v708
    %v1269 = vmul.f32 %v711, %v711
    %v1270 = vmul.f32 %v716, %v716
    %v1271 = vmul.f32 %v719, %v719
    %v1272 = vmul.f32 %v724, %v724
    %v1273 = vmul.f32 %v727, %v727
    %v1274 = vmul.f32 %v732, %v732
    %v1275 = vmul.f32 %v735, %v735
    %v1276 = vmul.f32 %v740, %v740
    %v1277 = vmul.f32 %v743, %v743
    %v1278 = vmul.f32 %v748, %v748
    %v1279 = vmul.f32 %v751, %v751
    %v1280 = vmul.f32 %v756, %v756
    %v1281 = vmul.f32 %v759, %v759
    %v1282 = vmul.f32 %v764, %v764
    %v1283 = vmul.f32 %v767, %v767
    %v1284 = vmul.f32 %v772, %v772
    %v1285 = vmul.f32 %v775, %v775
    %v1286 = vmul.f32 %v780, %v780
    %v1287 = vmul.f32 %v783, %v783
    %v1288 = vmul.f32 %v788, %v788
    %v1289 = vmul.f32 %v791, %v791
    %v1290 = vmul.f32 %v796, %v796
    %v1291 = vmul.f32 %v799, %v799
    %v1292 = vmul.f32 %v804, %v804
    %v1293 = vmul.f32 %v807, %v807
    %v1294 = vmul.f32 %v812, %v812
    %v1295 = vmul.f32 %v815, %v815
    %v1296 = vmul.f32 %v820, %v820
    %v1297 = vmul.f32 %v823, %v823
    %v1298 = vmul.f32 %v828, %v828
    %v1299 = vmul.f32 %v831, %v831
    %v1300 = vmul.f32 %v836, %v836
    %v1301 = vmul.f32 %v839, %v839
    %v1302 = vmul.f32 %v844, %v844
    %v1303 = vmul.f32 %v847, %v847
    %v1304 = vadd.f32 %v1240, %v1241
    %v1305 = vadd.f32 %v1304, %v1242
    %v1306 = vadd.f32 %v1305, %v1243
    %v1307 = vadd.f32 %v1306, %v1244
    %v1308 = vadd.f32 %v1307, %v1245
    %v1309 = vadd.f32 %v1308, %v1246
    %v1310 = vadd.f32 %v1309, %v1247
    %v1311 = vadd.f32 %v1310, %v1248
    %v1312 = vadd.f32 %v1311, %v1249
    %v1313 = vadd.f32 %v1312, %v1250
    %v1314 = vadd.f32 %v1313, %v1251
    %v1315 = vadd.f32 %v1314, %v1252
    %v1316 = vadd.f32 %v1315, %v1253
    %v1317 = vadd.f32 %v1316, %v1254
    %v1318 = vadd.f32 %v1317, %v1255
    %v1319 = vadd.f32 %v1318, %v1256
    %v1320 = vadd.f32 %v1319, %v1257
    %v1321 = vadd.f32 %v1320, %v1258
    %v1322 = vadd.f32 %v1321, %v1259
    %v1323 = vadd.f32 %v1322, %v1260
    %v1324 = vadd.f32 %v1323, %v1261
    %v1325 = vadd.f32 %v1324, %v1262
    %v1326 = vadd.f32 %v1325, %v1263
    %v1327 = vadd.f32 %v1326, %v1264
    %v1328 = vadd.f32 %v1327, %v1265
    %v1329 = vadd.f32 %v1328, %v1266
    %v1330 = vadd.f32 %v1329, %v1267
    %v1331 = vadd.f32 %v1330, %v1268
    %v1332 = vadd.f32 %v1331, %v1269
    %v1333 = vadd.f32 %v1332, %v1270
    %v1334 = vadd.f32 %v1333, %v1271
    %v1335 = vadd.f32 %v1334, %v1272
    %v1336 = vadd.f32 %v1335, %v1273
    %v1337 = vadd.f32 %v1336, %v1274
    %v1338 = vadd.f32 %v1337, %v1275
    %v1339 = vadd.f32 %v1338, %v1276
    %v1340 = vadd.f32 %v1339, %v1277
    %v1341 = vadd.f32 %v1340, %v1278
    %v1342 = vadd.f32 %v1341, %v1279
    %v1343 = vadd.f32 %v1342, %v1280
    %v1344 = vadd.f32 %v1343, %v1281
    %v1345 = vadd.f32 %v1344, %v1282
    %v1346 = vadd.f32 %v1345, %v1283
    %v1347 = vadd.f32 %v1346, %v1284
    %v1348 = vadd.f32 %v1347, %v1285
    %v1349 = vadd.f32 %v1348, %v1286
    %v1350 = vadd.f32 %v1349, %v1287
    %v1351 = vadd.f32 %v1350, %v1288
    %v1352 = vadd.f32 %v1351, %v1289
    %v1353 = vadd.f32 %v1352, %v1290
    %v1354 = vadd.f32 %v1353, %v1291
    %v1355 = vadd.f32 %v1354, %v1292
    %v1356 = vadd.f32 %v1355, %v1293
    %v1357 = vadd.f32 %v1356, %v1294
    %v1358 = vadd.f32 %v1357, %v1295
    %v1359 = vadd.f32 %v1358, %v1296
    %v1360 = vadd.f32 %v1359, %v1297
    %v1361 = vadd.f32 %v1360, %v1298
    %v1362 = vadd.f32 %v1361, %v1299
    %v1363 = vadd.f32 %v1362, %v1300
    %v1364 = vadd.f32 %v1363, %v1301
    %v1365 = vadd.f32 %v1364, %v1302
    %v1366 = vadd.f32 %v1365, %v1303
    %v1367 = vrot.slane %v1366, 4
    %v1368 = vadd.f32 %v1366, %v1367
    %v1369 = vrot.slane %v1368, 2
    %v1370 = vadd.f32 %v1368, %v1369
    %v1371 = vrot.slane %v1370, 1
    %v1372 = vadd.f32 %v1370, %v1371
    %vm1373 = vcmask 1040384
    %v1374 = vsel %vm1373, %v1239, %v1372
    %v1375 = vadd.f32 %v1170, %v1374
    %1376 = vst [vmem:[#allocation8] sm:$0x3] %v1375
    // Predicated region
    $region22: #{tpu_custom_call.1} parent=1 // pred_check
      _
    $region23: #{tpu_custom_call.1} parent=1 // pred_check_branch
      %1378 = sbr.rel (0) target = $region25
    $region24: #{tpu_custom_call.1} parent=1 // pred_region
      %s1380 = ssub.s32 4096, 4096
      %1381 = vsyncadd [#allocation4], %s1380
      %s1382 = sshll.u32 [#allocation7], 4
      %s1383 = int_to_ptr.vmem [resolvable:$true] %s1382
      %1388 = dma.vmem_to_hbm [thread:$0]  %s1383, 4096, %s2, [#allocation4], 64, 64, 4
    $region25: #{tpu_custom_call.1} parent=1 // pred_fallthru
      _
    // Predicated region
    $region26: #{tpu_custom_call.1} parent=1 // pred_check
      _
    $region27: #{tpu_custom_call.1} parent=1 // pred_check_branch
      %1390 = sbr.rel (0) target = $region29
    $region28: #{tpu_custom_call.1} parent=1 // pred_region
      %s1392 = ssub.s32 32, 32
      %1393 = vsyncadd [#allocation9], %s1392
      %s1395 = sshll.u32 [#allocation8], 4
      %s1396 = int_to_ptr.vmem [resolvable:$true] %s1395
      %1398 = dma.vmem_to_hbm [thread:$0]  %s1396, 32, %s3, [#allocation9]
    $region29: #{tpu_custom_call.1} parent=1 // pred_fallthru
      _
    // Predicated region
    $region30: #{tpu_custom_call.1} parent=1 // pred_check
      _
    $region31: #{tpu_custom_call.1} parent=1 // pred_check_branch
      %1400 = sbr.rel (0) target = $region33
    $region32: #{tpu_custom_call.1} parent=1 // pred_region
      %1401 = dma.done [#allocation4], 4096
    $region33: #{tpu_custom_call.1} parent=1 // pred_fallthru
      _
    // Predicated region
    $region34: #{tpu_custom_call.1} parent=1 // pred_check
      _
    $region35: #{tpu_custom_call.1} parent=1 // pred_check_branch
      %1403 = sbr.rel (0) target = $region37
    $region36: #{tpu_custom_call.1} parent=1 // pred_region
      %1404 = dma.done [#allocation9], 32
    $region37: #{tpu_custom_call.1} parent=1 // pred_fallthru
      _
    %1405 = vsyncpa [#allocation3], 1
    %1406 = vsyncpa [#allocation6], 1
    %1407 = vsyncpa [#allocation4], 1
    %1408 = vsyncpa [#allocation9], 1

</llo_original>
